<compile_context>
chip_gen: v6e
topology: v6e:2x2x1
jax: 0.10.0
libtpu: 0.0.40
codegen_flags: <defaults>
</compile_context>

<pallas_src>
import functools

import jax
import jax.numpy as jnp
from jax.experimental import pallas as pl
from jax.experimental.pallas import tpu as pltpu


def _round_up(x, m):
    return -(-x // m) * m


def _char_emb_kernel(seed_ref, idx_ref, table_ref, out_ref, *, dropout_p, train):
    """seed_ref: SMEM (1,) i32 (scalar prefetch); idx_ref: VMEM (1, T_TILE) i32
    (lane-dense token ids); table_ref: VMEM (n_chars, emb_dim) f32 (resident);
    out_ref: VMEM (T_TILE, emb_dim) f32."""
    t_tile, emb_dim = out_ref.shape
    n_chars = table_ref.shape[0]

    ids = idx_ref[...]                                            # (1, T_TILE) i32

    # One-hot gather on the MXU. padding_idx row of the table is zeroed at
    # init, so padded tokens embed to exactly zero, matching nn.Embedding.
    # TODO(synk): for large vocabularies replace with a DMA row-gather; the
    # one-hot matmul is O(T * n_chars * emb_dim).
    row_ids = jax.lax.broadcasted_iota(jnp.int32, (n_chars, t_tile), 0)
    onehot_t = (row_ids == ids).astype(jnp.float32)               # (n_chars, T_TILE)
    emb = jax.lax.dot_general(                                    # onehot_t^T @ table
        onehot_t, table_ref[...],
        dimension_numbers=(((0,), (0,)), ((), ())),
        preferred_element_type=jnp.float32)                       # (T_TILE, emb_dim)

    if train and dropout_p > 0.0:
        p = float(dropout_p)
        scale = jnp.float32(1.0 / (1.0 - p))
        thresh = jnp.int32(int(round(p * (1 << 24))))

        # Globally unique per-element counter -> mask independent of tiling,
        # distinct stream per tile (program_id is folded into the counter).
        row = jax.lax.broadcasted_iota(jnp.int32, (t_tile, emb_dim), 0)
        col = jax.lax.broadcasted_iota(jnp.int32, (t_tile, emb_dim), 1)
        cnt = (pl.program_id(0) * t_tile + row) * emb_dim + col

        # lowbias32-style integer mixer: VPU-only (mul/xor/shift), no float
        # conversion, integer threshold compare.
        x = cnt.astype(jnp.uint32) + seed_ref[0].astype(jnp.uint32) * jnp.uint32(0x9E3779B9)
        x = x ^ (x >> 16)
        x = x * jnp.uint32(0x7FEB352D)
        x = x ^ (x >> 15)
        x = x * jnp.uint32(0x846CA68B)
        x = x ^ (x >> 16)
        r24 = (x & jnp.uint32(0x00FFFFFF)).astype(jnp.int32)      # uniform in [0, 2^24)
        keep = r24 >= thresh                                      # P(keep) = 1 - p
        emb = jnp.where(keep, emb * scale, jnp.float32(0.0))      # inverted dropout

    out_ref[...] = emb
    # TODO(synk): self.char_model(...) is defined only by subclasses of
    # CharModel, so the forward here returns the (dropped-out) embeddings.


def char_model_forward(sentence, emb_table, *, dropout_p=0.5, train=True, seed=0):
    """sentence: (B, S) int token ids; emb_table: (n_chars, emb_dim) f32.
    Returns (B, S, emb_dim) f32 embeddings after (training-mode) dropout."""
    B, S = sentence.shape
    n_chars, emb_dim = emb_table.shape
    T = B * S

    # Tile the token axis. 512 rows/tile (multiple of 8) amortizes per-step
    # overhead while keeping double-buffered VMEM use well under budget on
    # v5e/v6e (128 MiB) and v7x (64 MiB). Pad T so the grid divides evenly;
    # padded slots use id 0 and are sliced off below.
    T8 = max(8, _round_up(T, 8))
    t_tile = 512 if T8 >= 512 else T8
    T_pad = _round_up(T8, t_tile)
    grid = (T_pad // t_tile,)

    idx = jnp.zeros((1, T_pad), dtype=jnp.int32)
    idx = idx.at[0, :T].set(jnp.reshape(sentence, (T,)).astype(jnp.int32))
    seed_arr = jnp.array([int(seed)], dtype=jnp.int32)

    kernel = functools.partial(
        _char_emb_kernel, dropout_p=float(dropout_p), train=bool(train))

    out = pl.pallas_call(
        kernel,
        out_shape=jax.ShapeDtypeStruct((T_pad, emb_dim), jnp.float32),
        grid_spec=pltpu.PrefetchScalarGridSpec(
            num_scalar_prefetch=1,          # seed lands in SMEM
            grid=grid,
            in_specs=[
                # Lane-dense token ids, tiled over T.
                pl.BlockSpec((1, t_tile), lambda i, seed: (0, i)),
                # Full embedding table, constant index -> VMEM-resident.
                pl.BlockSpec((n_chars, emb_dim), lambda i, seed: (0, 0)),
            ],
            out_specs=pl.BlockSpec((t_tile, emb_dim), lambda i, seed: (i, 0)),
        ),
        compiler_params=pltpu.CompilerParams(
            dimension_semantics=("parallel",),   # shard T tiles across TCs (v7x)
            vmem_limit_bytes=32 * 1024 * 1024,
        ),
    )(seed_arr, idx, emb_table)

    return out[:T].reshape(B, S, emb_dim)


def init_char_model_params(key, n_chars, emb_dim, padding_idx):
    """nn.Embedding-style init (N(0,1)), padding row zeroed."""
    table = jax.random.normal(key, (n_chars, emb_dim), dtype=jnp.float32)
    table = table.at[padding_idx].set(0.0)
    return table


if __name__ == "__main__":
    # Shapes consistent with the module: batch=2, seq=8, n_chars=50,
    # emb_dim=30 (module default), padding_idx=0.
    n_chars, emb_dim, padding_idx = 50, 30, 0
    B, S = 2, 8

    root = jax.random.PRNGKey(0)
    k_tok, k_emb = jax.random.split(root)

    sentence = jax.random.randint(k_tok, (B, S), 0, n_chars, dtype=jnp.int32)
    # Force a couple of padding tokens to exercise padding_idx behavior.
    sentence = sentence.at[0, 0].set(padding_idx).at[1, S - 1].set(padding_idx)

    emb_table = init_char_model_params(k_emb, n_chars, emb_dim, padding_idx)

    # Training mode (dropout active).
    out = char_model_forward(sentence, emb_table, dropout_p=0.5, train=True, seed=0)
    jax.block_until_ready(out)
    assert out.shape == (B, S, emb_dim), out.shape

    # Padding tokens must embed to exactly zero (dropout preserves zeros).
    assert float(jnp.abs(out[0, 0]).sum()) == 0.0
    assert float(jnp.abs(out[1, S - 1]).sum()) == 0.0

    # Dropout sanity: drop fraction over non-padding elements should be near p.
    nonpad = jnp.reshape(sentence, (-1,)) != padding_idx
    vals = jnp.reshape(out, (B * S, emb_dim))[nonpad]
    drop_frac = float(jnp.mean((vals == 0.0).astype(jnp.float32)))
    assert 0.2 < drop_frac < 0.8, drop_frac

    # Eval mode (no dropout) must match a pure-JAX embedding lookup exactly.
    out_eval = char_model_forward(sentence, emb_table, dropout_p=0.5, train=False)
    jax.block_until_ready(out_eval)
    ref = jnp.take(emb_table, sentence, axis=0)
    assert bool(jnp.allclose(out_eval, ref, atol=1e-5, rtol=1e-5))

    print("KERNEL_OK")
</pallas_src>

<mosaic_0001>
module attributes {stable_mosaic.version = 11 : i64} {
  func.func @_char_emb_kernel(%arg0: i32, %arg1: memref<1xi32, #tpu.memory_space<smem>>, %arg2: memref<1x16xi32, #tpu.memory_space<vmem>>, %arg3: memref<50x30xf32, #tpu.memory_space<vmem>>, %arg4: memref<16x30xf32, #tpu.memory_space<vmem>>) attributes {dimension_semantics = [#tpu.dimension_semantics<parallel>], iteration_bounds = array<i64: 1>, scalar_prefetch = 1 : i64, scratch_operands = 0 : i64, tpu.core_type = #tpu.core_type<tc>, window_params = [{transform_indices = @transform_0, window_bounds = array<i64: 1, 16>}, {pipeline_mode = #tpu.pipeline_mode<synchronous>, transform_indices = @transform_1, window_bounds = array<i64: 50, 30>}, {transform_indices = @transform_2, window_bounds = array<i64: 16, 30>}]} {
    %c0 = arith.constant 0 : index
    %c0_0 = arith.constant 0 : index
    %0 = vector.load %arg2[%c0, %c0_0] : memref<1x16xi32, #tpu.memory_space<vmem>>, vector<1x16xi32>
    %1 = tpu.iota {dimensions = array<i32: 0>} : vector<50x16xi32>
    %2 = vector.broadcast %0 : vector<1x16xi32> to vector<50x16xi32>
    %3 = arith.cmpi eq, %1, %2 : vector<50x16xi32>
    %4 = arith.extui %3 : vector<50x16xi1> to vector<50x16xi32>
    %5 = arith.sitofp %4 : vector<50x16xi32> to vector<50x16xf32>
    %c0_1 = arith.constant 0 : index
    %c0_2 = arith.constant 0 : index
    %6 = vector.load %arg3[%c0_1, %c0_2] : memref<50x30xf32, #tpu.memory_space<vmem>>, vector<50x30xf32>
    %cst = arith.constant dense<0.000000e+00> : vector<16x30xf32>
    %7 = tpu.matmul %5, %6, %cst {dimension_numbers = #tpu.dot_dimension_numbers<[0], [0], [1], [1], [0, 1, 1, 1], [], []>} : vector<50x16xf32>, vector<50x30xf32>, vector<16x30xf32> -> vector<16x30xf32>
    %8 = tpu.iota {dimensions = array<i32: 0>} : vector<16x30xi32>
    %9 = tpu.iota {dimensions = array<i32: 1>} : vector<16x30xi32>
    %c16_i32 = arith.constant 16 : i32
    %10 = arith.muli %arg0, %c16_i32 : i32
    %11 = vector.broadcast %10 : i32 to vector<16x30xi32>
    %12 = arith.addi %11, %8 : vector<16x30xi32>
    %c30_i32 = arith.constant 30 : i32
    %13 = vector.broadcast %c30_i32 : i32 to vector<16x30xi32>
    %14 = arith.muli %12, %13 : vector<16x30xi32>
    %15 = arith.addi %14, %9 : vector<16x30xi32>
    %c0_3 = arith.constant 0 : index
    %16 = memref.load %arg1[%c0_3] : memref<1xi32, #tpu.memory_space<smem>>
    %c-1640531527_i32 = arith.constant -1640531527 : i32
    %17 = arith.muli %16, %c-1640531527_i32 : i32
    %18 = vector.broadcast %17 : i32 to vector<16x30xi32>
    %19 = arith.addi %15, %18 : vector<16x30xi32>
    %c16_i32_4 = arith.constant 16 : i32
    %20 = vector.broadcast %c16_i32_4 : i32 to vector<16x30xi32>
    %21 = arith.shrui %19, %20 : vector<16x30xi32>
    %22 = arith.xori %19, %21 : vector<16x30xi32>
    %c2146121005_i32 = arith.constant 2146121005 : i32
    %23 = vector.broadcast %c2146121005_i32 : i32 to vector<16x30xi32>
    %24 = arith.muli %22, %23 : vector<16x30xi32>
    %c15_i32 = arith.constant 15 : i32
    %25 = vector.broadcast %c15_i32 : i32 to vector<16x30xi32>
    %26 = arith.shrui %24, %25 : vector<16x30xi32>
    %27 = arith.xori %24, %26 : vector<16x30xi32>
    %c-2073254261_i32 = arith.constant -2073254261 : i32
    %28 = vector.broadcast %c-2073254261_i32 : i32 to vector<16x30xi32>
    %29 = arith.muli %27, %28 : vector<16x30xi32>
    %c16_i32_5 = arith.constant 16 : i32
    %30 = vector.broadcast %c16_i32_5 : i32 to vector<16x30xi32>
    %31 = arith.shrui %29, %30 : vector<16x30xi32>
    %32 = arith.xori %29, %31 : vector<16x30xi32>
    %c16777215_i32 = arith.constant 16777215 : i32
    %33 = vector.broadcast %c16777215_i32 : i32 to vector<16x30xi32>
    %34 = arith.andi %32, %33 : vector<16x30xi32>
    %c8388608_i32 = arith.constant 8388608 : i32
    %35 = vector.broadcast %c8388608_i32 : i32 to vector<16x30xi32>
    %36 = arith.cmpi sge, %34, %35 : vector<16x30xi32>
    %cst_6 = arith.constant 2.000000e+00 : f32
    %37 = vector.broadcast %cst_6 : f32 to vector<16x30xf32>
    %38 = arith.mulf %7, %37 : vector<16x30xf32>
    %cst_7 = arith.constant 0.000000e+00 : f32
    %39 = vector.broadcast %cst_7 : f32 to vector<16x30xf32>
    %40 = arith.select %36, %38, %39 : vector<16x30xi1>, vector<16x30xf32>
    %c0_8 = arith.constant 0 : index
    %c0_9 = arith.constant 0 : index
    %41 = vector.load %arg4[%c0_8, %c0_9] : memref<16x30xf32, #tpu.memory_space<vmem>>, vector<16x30xf32>
    tpu.vector_store %arg4[%c0_8, %c0_9], %40 {strides = array<i32>} : memref<16x30xf32, #tpu.memory_space<vmem>>, vector<16x30xf32>,
    return
  }
  func.func @transform_0(%arg0: i32, %arg1: memref<1xi32, #tpu.memory_space<smem>>) -> (i32, i32) {
    %c0_i32 = arith.constant 0 : i32
    %c0_i32_0 = arith.constant 0 : i32
    return %c0_i32, %arg0 : i32, i32
  }
  func.func @transform_1(%arg0: i32, %arg1: memref<1xi32, #tpu.memory_space<smem>>) -> (i32, i32) {
    %c0_i32 = arith.constant 0 : i32
    %c0_i32_0 = arith.constant 0 : i32
    %c0_i32_1 = arith.constant 0 : i32
    return %c0_i32, %c0_i32_0 : i32, i32
  }
  func.func @transform_2(%arg0: i32, %arg1: memref<1xi32, #tpu.memory_space<smem>>) -> (i32, i32) {
    %c0_i32 = arith.constant 0 : i32
    %c0_i32_0 = arith.constant 0 : i32
    return %arg0, %c0_i32 : i32, i32
  }
}

</mosaic_0001>

<llo_original>
// kernel: tpu_custom_call.1
$region0: #{tpu_custom_call.1}
  #allocation0 [shape = 'u32[]', space=smem, size = 0x4, offset = 0x4, fixed_abs, tag = 'smem constant byte address 0x4 - core index']
  #allocation1 [shape = 'u32[144,128]{1,0:T(1,128)}', space=vmem, size = 0x12000, scoped, tag = 'internal scratch']
  #allocation2 [shape = 's32[1]{0}', space=sflag, size = 0x4, scoped, tag = 'scoped memory for tpu_custom_call.1']
  #allocation3 [shape = 's32[1]{0:T(128)S(6)}', space=smem, size = 0x200, scoped, tag = 'prefetched SMEM operand 0']
  %s0 = inlined_call_operand.<no memory space> [shape: s32[1], index: 0, kind: input, shape index: {}]
  %s1 = inlined_call_operand.vmem [shape: s32[1,16], index: 1, kind: input, shape index: {}]
  %s2 = inlined_call_operand.vmem [shape: f32[50,30], index: 2, kind: input, shape index: {}]
  %s3 = inlined_call_operand.hbm [shape: f32[16,30], index: 3, kind: output, shape index: {}]
  %s4 = sld [smem:[#allocation0]]
  $region18: #{tpu_custom_call.1} parent=0
    _
  %s6 = ssub.s32 1, %s4
  %s7 = scalar_select 0, %s6, %s4
  %8 = sst [smem:[#allocation3]] %s0
  $region1: #{tpu_custom_call.1} parent=0
    #allocation4 [shape = 'u8[8192]{0}', space=vmem, size = 0x2000, scoped, tag = 'output window, operand 0, single buffered']
    #allocation5 [shape = 's32[1]{0}', space=sflag, size = 0x4, scoped, tag = 'scoped memory for tpu_custom_call.1']
    %9 = vsyncpa [#allocation5], 0
    // Predicated region
    $region2: #{tpu_custom_call.1} parent=1 // pred_check
      _
    $region3: #{tpu_custom_call.1} parent=1 // pred_check_branch
      %11 = sbr.rel (0) target = $region5
    $region4: #{tpu_custom_call.1} parent=1 // pred_region
      _
    $region5: #{tpu_custom_call.1} parent=1 // pred_fallthru
      _
    // Predicated region
    $region6: #{tpu_custom_call.1} parent=1 // pred_check
      _
    $region7: #{tpu_custom_call.1} parent=1 // pred_check_branch
      %13 = sbr.rel (0) target = $region9
    $region8: #{tpu_custom_call.1} parent=1 // pred_region
      _
    $region9: #{tpu_custom_call.1} parent=1 // pred_fallthru
      _
    %v14 = vld [vmem:[%s1] sm:$0x1]
    %v15 = vlaneseq
    %v16 = vshrl.u32 %v15, 7
    %v17 = vadd.s32 %v16, 8
    %v18 = vadd.s32 %v16, 16
    %v19 = vadd.s32 %v16, 24
    %v20 = vadd.s32 %v16, 32
    %v21 = vadd.s32 %v16, 40
    %v22 = vadd.s32 %v16, 48
    %v23 = vlaneseq
    %v24 = vshrl.u32 %v23, 7
    %v25 = vsub.s32 0, %v24
    %v26 = vrot.slane %v14, %v25
    %vm27 = vcmp.eq.s32.totalorder %v16, %v26
    %vm28 = vcmp.eq.s32.totalorder %v17, %v26
    %vm29 = vcmp.eq.s32.totalorder %v18, %v26
    %vm30 = vcmp.eq.s32.totalorder %v19, %v26
    %vm31 = vcmp.eq.s32.totalorder %v20, %v26
    %vm32 = vcmp.eq.s32.totalorder %v21, %v26
    %vm33 = vcmp.eq.s32.totalorder %v22, %v26
    %v34 = vsel %vm27, 1, 0
    %v35 = vsel %vm28, 1, 0
    %v36 = vsel %vm29, 1, 0
    %v37 = vsel %vm30, 1, 0
    %v38 = vsel %vm31, 1, 0
    %v39 = vsel %vm32, 1, 0
    %v40 = vsel %vm33, 1, 0
    %v41 = vcvt.s32.f32 %v34
    %v42 = vcvt.s32.f32 %v35
    %v43 = vcvt.s32.f32 %v36
    %v44 = vcvt.s32.f32 %v37
    %v45 = vcvt.s32.f32 %v38
    %v46 = vcvt.s32.f32 %v39
    %v47 = vcvt.s32.f32 %v40
    %v48 = vld [vmem:[%s2] sm:$0xff]
    %v49 = vld [vmem:[%s2 + $0x8] sm:$0xff]
    %v50 = vld [vmem:[%s2 + $0x10] sm:$0xff]
    %v51 = vld [vmem:[%s2 + $0x18] sm:$0xff]
    %v52 = vld [vmem:[%s2 + $0x20] sm:$0xff]
    %v53 = vld [vmem:[%s2 + $0x28] sm:$0xff]
    %v54 = vld [vmem:[%s2 + $0x30] sm:$0x3]
    %55 = vxpose.xlu0.b32.start [1/16] %v41, 128
    %56 = vxpose.xlu0.b32.cont [2/16] %v42, 128
    %57 = vxpose.xlu0.b32.cont [3/16] %v43, 128
    %58 = vxpose.xlu0.b32.cont [4/16] %v44, 128
    %59 = vxpose.xlu0.b32.cont [5/16] %v45, 128
    %60 = vxpose.xlu0.b32.cont [6/16] %v46, 128
    %61 = vxpose.xlu0.b32.cont [7/16] %v47, 128
    %62 = vxpose.xlu0.b32.cont [8/16] 0.0, 128
    %63 = vxpose.xlu0.b32.cont [9/16] 0.0, 128
    %64 = vxpose.xlu0.b32.cont [10/16] 0.0, 128
    %65 = vxpose.xlu0.b32.cont [11/16] 0.0, 128
    %66 = vxpose.xlu0.b32.cont [12/16] 0.0, 128
    %67 = vxpose.xlu0.b32.cont [13/16] 0.0, 128
    %68 = vxpose.xlu0.b32.cont [14/16] 0.0, 128
    %69 = vxpose.xlu0.b32.cont [15/16] 0.0, 128
    %70 = vxpose.xlu0.b32.end [16/16] 0.0, 128
    %v71 = vpop.trf.xlu0
    %v72 = vpop.trf.xlu0
    %v73 = vpop.trf.xlu0
    %v74 = vpop.trf.xlu0
    %v75 = vpop.trf.xlu0
    %v76 = vpop.trf.xlu0
    %v77 = vpop.trf.xlu0
    %v78 = vpop.trf.xlu0
    %v79 = vpop.trf.xlu0
    %v80 = vpop.trf.xlu0
    %v81 = vpop.trf.xlu0
    %v82 = vpop.trf.xlu0
    %v83 = vpop.trf.xlu0
    %v84 = vpop.trf.xlu0
    %v85 = vpop.trf.xlu0
    %v86 = vpop.trf.xlu0
    %vm87 = vcmask 408576
    %v89 = vsel %vm87, %v71, 0
    %v92 = vsel %vm87, %v72, 0
    %vm94 = vcmask 1041408
    %v96 = vsel %vm94, %v54, 0
    %98 = vmatprep.subr.mxu0 0.0
    %99 = vmatpush1.msra.mxu0 0.0
    %100 = vmatprep.subr.mxu0 0.0
    %101 = vmatpush1.msra.mxu0 0.0
    %102 = vmatprep.subr.mxu0 0.0
    %103 = vmatpush1.msra.mxu0 0.0
    %104 = vmatprep.subr.mxu0 0.0
    %105 = vmatpush1.msra.mxu0 0.0
    %106 = vmatprep.subr.mxu0 0.0
    %107 = vmatpush1.msra.mxu0 0.0
    %108 = vmatprep.subr.mxu0 0.0
    %109 = vmatpush1.msra.mxu0 0.0
    %110 = vmatprep.subr.mxu0 0.0
    %111 = vmatpush1.msra.mxu0 0.0
    %112 = vmatprep.subr.mxu0 0.0
    %113 = vmatpush1.msra.mxu0 0.0
    %114 = vmatprep.subr.mxu0 0.0
    %115 = vmatpush1.msra.mxu0 0.0
    %116 = vmatprep.subr.mxu0 0.0
    %117 = vmatpush1.msra.mxu0 %v96
    %118 = vmatprep.subr.mxu0 0.0
    %119 = vmatpush1.msra.mxu0 %v53
    %120 = vmatprep.subr.mxu0 0.0
    %121 = vmatpush1.msra.mxu0 %v52
    %122 = vmatprep.subr.mxu0 0.0
    %123 = vmatpush1.msra.mxu0 %v51
    %124 = vmatprep.subr.mxu0 0.0
    %125 = vmatpush1.msra.mxu0 %v50
    %126 = vmatprep.subr.mxu0 0.0
    %127 = vmatpush1.msra.mxu0 %v49
    %128 = vmatprep.subr.mxu0 0.0
    %129 = vmatpush1.msra.mxu0 %v48
    %130 = vmatprep.subr.mxu0 0.0
    %131 = vmatpush2.msra.mxu0 0.0
    %132 = vmatprep.subr.mxu0 0.0
    %133 = vmatpush2.msra.mxu0 0.0
    %134 = vmatprep.subr.mxu0 0.0
    %135 = vmatpush2.msra.mxu0 0.0
    %136 = vmatprep.subr.mxu0 0.0
    %137 = vmatpush2.msra.mxu0 0.0
    %138 = vmatprep.subr.mxu0 0.0
    %139 = vmatpush2.msra.mxu0 0.0
    %140 = vmatprep.subr.mxu0 0.0
    %141 = vmatpush2.msra.mxu0 0.0
    %142 = vmatprep.subr.mxu0 0.0
    %143 = vmatpush2.msra.mxu0 0.0
    %144 = vmatprep.subr.mxu0 0.0
    %145 = vmatpush2.msra.mxu0 0.0
    %146 = vmatprep.subr.mxu0 0.0
    %147 = vmatpush2.msra.mxu0 0.0
    %148 = vmatprep.subr.mxu0 0.0
    %149 = vmatpush2.msra.mxu0 0.0
    %150 = vmatprep.subr.mxu0 0.0
    %151 = vmatpush2.msra.mxu0 0.0
    %152 = vmatprep.subr.mxu0 0.0
    %153 = vmatpush2.msra.mxu0 0.0
    %154 = vmatprep.subr.mxu0 0.0
    %155 = vmatpush2.msra.mxu0 0.0
    %156 = vmatprep.subr.mxu0 0.0
    %157 = vmatpush2.msra.mxu0 0.0
    %158 = vmatprep.subr.mxu0 0.0
    %159 = vmatpush2.msra.mxu0 0.0
    %160 = vmatprep.subr.mxu0 0.0
    %161 = vmatpush2.msra.mxu0 0.0
    %162 = vmatprep.mubr.f32.mxu0 0.0
    %163 = vmatmul.mubr.f32.gmra.mxu0 %v89
    %v164 = vpop.f32.mrf.mxu0
    %v165 = vadd.f32 0.0, %v164
    %v166 = vpop.f32.mrf.mxu0
    %167 = vmatprep.mubr.f32.mxu0 0.0
    %168 = vmatmul.mubr.f32.gmra.mxu0 %v92
    %v169 = vpop.f32.mrf.mxu0
    %v170 = vadd.f32 0.0, %v169
    %v171 = vpop.f32.mrf.mxu0
    %172 = vdwg.mxu0
    %v173 = vlaneseq
    %v174 = vand.u32 %v173, 127
    %s175 = smul.u32 0, 16
    %v176 = vstv %s175
    %v177 = vadd.s32 %v176, %v16
    %v178 = vadd.s32 %v176, %v17
    %v179 = vmul.u32 %v177, 30
    %v180 = vmul.u32 %v178, 30
    %v181 = vadd.s32 %v179, %v174
    %v182 = vadd.s32 %v180, %v174
    %s183 = sld [smem:[#allocation3]]
    %s184 = smul.u32 %s183, 2654435769
    %v185 = vstv %s184
    %v186 = vadd.s32 %v181, %v185
    %v187 = vadd.s32 %v182, %v185
    %v188 = vshrl.u32 %v186, 16
    %v189 = vshrl.u32 %v187, 16
    %v190 = vxor.u32 %v186, %v188
    %v191 = vxor.u32 %v187, %v189
    %v192 = vmul.u32 %v190, 2146121005
    %v193 = vmul.u32 %v191, 2146121005
    %v194 = vshrl.u32 %v192, 15
    %v195 = vshrl.u32 %v193, 15
    %v196 = vxor.u32 %v192, %v194
    %v197 = vxor.u32 %v193, %v195
    %v198 = vmul.u32 %v196, 2221713035
    %v199 = vmul.u32 %v197, 2221713035
    %v200 = vshrl.u32 %v198, 16
    %v201 = vshrl.u32 %v199, 16
    %v202 = vxor.u32 %v198, %v200
    %v203 = vxor.u32 %v199, %v201
    %v204 = vand.u32 %v202, 16777215
    %v205 = vand.u32 %v203, 16777215
    %vm206 = vcmp.ge.s32.totalorder %v204, 8388608
    %vm207 = vcmp.ge.s32.totalorder %v205, 8388608
    %v208 = vmul.f32 %v165, 2.0
    %v209 = vmul.f32 %v170, 2.0
    %v210 = vsel %vm206, %v208, 0.0
    %v211 = vsel %vm207, %v209, 0.0
    %vm212 = vcmask 244736
    %213 = vst.msk [vmem:[#allocation4] sm:$0xff] %vm212, %v210
    %214 = vst.msk [vmem:[#allocation4 + $0x8] sm:$0xff] %vm212, %v211
    // Predicated region
    $region10: #{tpu_custom_call.1} parent=1 // pred_check
      _
    $region11: #{tpu_custom_call.1} parent=1 // pred_check_branch
      %216 = sbr.rel (0) target = $region13
    $region12: #{tpu_custom_call.1} parent=1 // pred_region
      %s218 = ssub.s32 256, 256
      %219 = vsyncadd [#allocation5], %s218
      %s220 = sshll.u32 [#allocation4], 4
      %s221 = int_to_ptr.vmem [resolvable:$true] %s220
      %226 = dma.vmem_to_hbm [thread:$0]  %s221, 256, %s3, [#allocation5], 128, 128, 8
    $region13: #{tpu_custom_call.1} parent=1 // pred_fallthru
      _
    // Predicated region
    $region14: #{tpu_custom_call.1} parent=1 // pred_check
      _
    $region15: #{tpu_custom_call.1} parent=1 // pred_check_branch
      %228 = sbr.rel (0) target = $region17
    $region16: #{tpu_custom_call.1} parent=1 // pred_region
      %229 = dma.done [#allocation5], 256
    $region17: #{tpu_custom_call.1} parent=1 // pred_fallthru
      _
    %230 = vsyncpa [#allocation5], 1

</llo_original>
